<compile_context>
chip_gen: v6e
topology: v6e:2x2x1
jax: 0.10.0
libtpu: 0.0.40
codegen_flags: <defaults>
</compile_context>

<pallas_src>
import functools
import math

import jax
import jax.numpy as jnp
import numpy as np
from jax.experimental import pallas as pl
from jax.experimental.pallas import tpu as pltpu

BATCH_SIZE = 4
CLUSTER_NUM = 3
LATENT_DIM = 2
LOG_2PI = math.log(2.0 * math.pi)


def _gmm_kernel(params_ref, data_ref, out_ref, *, D, C):
    """Fused GMM posterior + negative ELBO-style loss (lane-dense: B on lanes).

    params_ref : SMEM (2*D*C + 3*C + 1,) f32
                 [0 : D*C]              1/var[d,c]            (d-major)
                 [D*C : 2*D*C]          mu[d,c]/var[d,c]      (d-major)
                 [2DC : 2DC+C]          per-cluster log-lik constant
                 [2DC+C : 2DC+2C]       log prior[c]
                 [2DC+2C : 2DC+3C]      sum_d mu[d,c]^2/var[d,c]
                 [2DC+3C]               0.5*D^2*log(2pi) + sum_{d,c} log var
    data_ref   : VMEM (3, D, B) f32 -- [0]=z, [1]=z_mean, [2]=z_log_variance_sq
    out_ref    : VMEM (C+1, B) f32  -- rows [0:C] = P(c|x), row C = negative loss
    """
    DC = D * C
    x = data_ref[...]                              # (3, D, B)
    z, zm, zlv = x[0], x[1], x[2]                  # (D, B) each (vreg selection)

    zsq, zmsq, ez = z * z, zm * zm, jnp.exp(zlv)   # full-tile VPU / EUP ops

    # (1, B) row views of each feature, indexed by latent dim d.
    rows = lambda a: [a[d:d + 1, :] for d in range(D)]
    z_r, zm_r, zsq_r, zmsq_r, ez_r = map(rows, (z, zm, zsq, zmsq, ez))

    # Scalar parameter accessors (SMEM reads, static indices).
    inv_var = lambda d, c: params_ref[d * C + c]
    mu_inv = lambda d, c: params_ref[DC + d * C + c]
    const = lambda c: params_ref[2 * DC + c]
    log_prior = lambda c: params_ref[2 * DC + C + c]
    m2 = lambda c: params_ref[2 * DC + 2 * C + c]
    k_const = params_ref[2 * DC + 3 * C]

    def contract(feat_rows, coef, c):
        # sum_d feat[d, :] * coef(d, c): unrolled scalar-broadcast FMAs (VPU).
        acc = feat_rows[0] * coef(0, c)
        for d in range(1, D):
            acc = acc + feat_rows[d] * coef(d, c)
        return acc

    e_l, logit_l = [], []
    denom = None
    sec_sum = None
    for c in range(C):
        ya_z = contract(zsq_r, inv_var, c)         # sum_d z^2            / var_c
        ya_zm = contract(zmsq_r, inv_var, c)       # sum_d z_mean^2       / var_c
        ya_ev = contract(ez_r, inv_var, c)         # sum_d exp(z_log_var) / var_c
        yb_z = contract(z_r, mu_inv, c)            # sum_d z      * mu_c  / var_c
        yb_zm = contract(zm_r, mu_inv, c)          # sum_d z_mean * mu_c  / var_c

        # log N(z | mu_c, var_c) summed over d, plus D*log(prior_c)
        # (prior counted once per latent dim -- intentional quirk of reference).
        logit = const(c) - 0.5 * ya_z + yb_z                              # (1, B)
        e_c = jnp.exp(logit) + 1e-10                                      # floor per reference
        # (z_mean - mu_c)^2/var_c + exp(z_log_var)/var_c, summed over d.
        sec_c = ya_ev + ya_zm - 2.0 * yb_zm + m2(c)                       # (1, B)

        e_l.append(e_c)
        logit_l.append(logit)
        denom = e_c if denom is None else denom + e_c
        sec_sum = sec_c if sec_sum is None else sec_sum + sec_c

    inv_denom = pl.reciprocal(denom)               # exact reciprocal (review note)
    log_denom = jnp.log(denom)                     # one log per row

    third = None
    p_l = []
    for c in range(C):
        p_c = e_l[c] * inv_denom
        p_l.append(p_c)
        # log P = logit - log(denom); the 1e-10 floor is negligible here.
        t_c = p_c * (logit_l[c] - log_denom - log_prior(c))
        third = t_c if third is None else third + t_c

    # second term: 0.5*D^2*log(2pi)*sum_c P(==1) + sum_{d,c} log var + sec_sum
    second = sec_sum + k_const                                            # (1, B)
    forth = 0.5 * jnp.sum(zlv + 1.0, axis=0, keepdims=True)               # (1, B)
    neg_loss = second - third - forth     # = -( -second + third + forth )

    # Direct row stores (no width-1 lane concat); single fused output DMA.
    for c in range(C):
        out_ref[c:c + 1, :] = p_l[c]
    out_ref[C:C + 1, :] = neg_loss


def gaussian_mixture_forward(z_mean, z_log_variance_sq, z,
                             cluster_mean, cluster_variance_sq, cluster_prior):
    """Wrapper mirroring gaussianMixtureModel.forward -> (P_c_given_x, negative_loss)."""
    B, D = z.shape
    C = cluster_prior.shape[0]
    assert (D, C) == cluster_mean.shape == cluster_variance_sq.shape

    f32 = jnp.float32
    # Lane-dense data slab: batch on lanes, latent dim on sublanes; the three
    # segments are tile-aligned via the leading axis of size 3.
    data = jnp.stack([z.T, z_mean.T, z_log_variance_sq.T], axis=0).astype(f32)  # (3, D, B)

    # Pre-derived static cluster parameters -> one flat SMEM scalar vector.
    var = cluster_variance_sq.astype(f32)
    mu = cluster_mean.astype(f32)
    prior = cluster_prior.astype(f32)
    inv_var = 1.0 / var                                       # (D, C)
    mu_inv = mu * inv_var                                     # (D, C)
    m2 = jnp.sum(mu * mu_inv, axis=0)                         # (C,)  sum_d mu^2/var
    log_var = jnp.log(var)                                    # (D, C)
    log_prior = jnp.log(prior)                                # (C,)
    const = (D * log_prior
             - 0.5 * jnp.sum(log_var + LOG_2PI, axis=0)
             - 0.5 * m2)                                      # (C,)
    k_const = 0.5 * (D * D) * LOG_2PI + jnp.sum(log_var)      # scalar (sum_c P == 1)
    params = jnp.concatenate(
        [inv_var.reshape(-1), mu_inv.reshape(-1),
         const, log_prior, m2, k_const.reshape(1)]).astype(f32)   # (2*D*C + 3*C + 1,)

    # TODO(synk): for large B, grid over the (lane) batch axis -- block of a few
    # thousand columns, dimension_semantics=("parallel",) so v7x's two
    # TensorCores are used, and budget the double-buffered block against v7x's
    # 64 MiB VMEM (raise vmem_limit_bytes explicitly).  At B=4 this op should
    # really be fused into the surrounding encoder/decoder kernel or left to
    # XLA; the standalone pallas_call is kept because that is the task.
    out = pl.pallas_call(
        functools.partial(_gmm_kernel, D=D, C=C),
        out_shape=jax.ShapeDtypeStruct((C + 1, B), f32),
        in_specs=[pl.BlockSpec(memory_space=pltpu.MemorySpace.SMEM),
                  pl.BlockSpec(memory_space=pltpu.MemorySpace.VMEM)],
        out_specs=pl.BlockSpec(memory_space=pltpu.MemorySpace.VMEM),
    )(params, data)
    return out[:C, :].T, out[C, :]


def _reference(z_mean, z_lv, z, mu, var, prior):
    """Pure-JAX transliteration of the PyTorch forward (for verification)."""
    B, D = z.shape
    mu_b = mu[None]                      # (1, D, C)
    var_b = var[None]                    # (1, D, C)
    terms = (jnp.log(prior)[None, None]
             - 0.5 * jnp.log(2.0 * math.pi * var_b)
             - (z[:, :, None] - mu_b) ** 2 / (2.0 * var_b))
    P_un = jnp.exp(terms.sum(1)) + 1e-10
    P = P_un / P_un.sum(-1, keepdims=True)
    tmp1 = 0.5 * P[:, None, :] * (D * LOG_2PI)
    tmp2 = jnp.log(var_b)
    tmp3 = jnp.exp(z_lv)[:, :, None] / var_b
    tmp4 = z_mean[:, :, None] - mu_b
    tmp5 = tmp4 * tmp4 / var_b
    second = (tmp1 + tmp2 + tmp3 + tmp5).sum((1, 2))
    tmp6 = (P * jnp.log(P)).sum(1)
    tmp7 = (P * jnp.log(prior)[None]).sum(1)
    third = tmp6 - tmp7
    forth = 0.5 * (z_lv + 1.0).sum(1)
    loss = -second + third + forth
    return P, -loss


if __name__ == "__main__":
    key = jax.random.PRNGKey(0)
    k1, k2, k3, k4, k5, k6 = jax.random.split(key, 6)

    # Inputs (torch.rand analogue): (batch_size, latent_dim)
    z = jax.random.uniform(k1, (BATCH_SIZE, LATENT_DIM), dtype=jnp.float32)
    z_log_variance_sq = jax.random.uniform(k2, (BATCH_SIZE, LATENT_DIM),
                                           dtype=jnp.float32)
    z_mean = jax.random.uniform(k3, (BATCH_SIZE, LATENT_DIM), dtype=jnp.float32)

    # Deterministic parameter init (shapes from __init__; values made non-trivial).
    cluster_mean = jax.random.normal(k4, (LATENT_DIM, CLUSTER_NUM),
                                     dtype=jnp.float32) * 0.5
    cluster_variance_sq = 0.5 + jax.random.uniform(k5, (LATENT_DIM, CLUSTER_NUM),
                                                   dtype=jnp.float32)
    prior_logits = jax.random.normal(k6, (CLUSTER_NUM,), dtype=jnp.float32)
    cluster_prior = jax.nn.softmax(prior_logits)

    P, neg_loss = gaussian_mixture_forward(
        z_mean, z_log_variance_sq, z,
        cluster_mean, cluster_variance_sq, cluster_prior)
    jax.block_until_ready((P, neg_loss))

    P_ref, neg_loss_ref = _reference(
        z_mean, z_log_variance_sq, z,
        cluster_mean, cluster_variance_sq, cluster_prior)

    ok = (np.allclose(np.asarray(P), np.asarray(P_ref), rtol=2e-3, atol=1e-4)
          and np.allclose(np.asarray(neg_loss), np.asarray(neg_loss_ref),
                          rtol=2e-3, atol=1e-3))
    if not ok:
        raise AssertionError("Pallas kernel does not match reference")

    print("KERNEL_OK")
</pallas_src>

<mosaic_0001>
module attributes {stable_mosaic.version = 11 : i64} {
  func.func @_gmm_kernel(%arg0: memref<22xf32, #tpu.memory_space<smem>>, %arg1: memref<3x2x4xf32, #tpu.memory_space<vmem>>, %arg2: memref<4x4xf32, #tpu.memory_space<vmem>>) attributes {dimension_semantics = [], scalar_prefetch = 0 : i64, scratch_operands = 0 : i64, tpu.core_type = #tpu.core_type<tc>} {
    %c0 = arith.constant 0 : index
    %c0_0 = arith.constant 0 : index
    %c0_1 = arith.constant 0 : index
    %0 = vector.load %arg1[%c0, %c0_0, %c0_1] : memref<3x2x4xf32, #tpu.memory_space<vmem>>, vector<3x2x4xf32>
    %1 = vector.extract_strided_slice %0 {offsets = [0, 0, 0], sizes = [1, 2, 4], strides = [1, 1, 1]} : vector<3x2x4xf32> to vector<1x2x4xf32>
    %2 = vector.shape_cast %1 : vector<1x2x4xf32> to vector<2x4xf32>
    %3 = vector.extract_strided_slice %0 {offsets = [1, 0, 0], sizes = [1, 2, 4], strides = [1, 1, 1]} : vector<3x2x4xf32> to vector<1x2x4xf32>
    %4 = vector.shape_cast %3 : vector<1x2x4xf32> to vector<2x4xf32>
    %5 = vector.extract_strided_slice %0 {offsets = [2, 0, 0], sizes = [1, 2, 4], strides = [1, 1, 1]} : vector<3x2x4xf32> to vector<1x2x4xf32>
    %6 = vector.shape_cast %5 : vector<1x2x4xf32> to vector<2x4xf32>
    %7 = arith.mulf %2, %2 : vector<2x4xf32>
    %8 = arith.mulf %4, %4 : vector<2x4xf32>
    %9 = math.exp %6 : vector<2x4xf32>
    %10 = vector.extract_strided_slice %2 {offsets = [0, 0], sizes = [1, 4], strides = [1, 1]} : vector<2x4xf32> to vector<1x4xf32>
    %11 = vector.extract_strided_slice %2 {offsets = [1, 0], sizes = [1, 4], strides = [1, 1]} : vector<2x4xf32> to vector<1x4xf32>
    %12 = vector.extract_strided_slice %4 {offsets = [0, 0], sizes = [1, 4], strides = [1, 1]} : vector<2x4xf32> to vector<1x4xf32>
    %13 = vector.extract_strided_slice %4 {offsets = [1, 0], sizes = [1, 4], strides = [1, 1]} : vector<2x4xf32> to vector<1x4xf32>
    %14 = vector.extract_strided_slice %7 {offsets = [0, 0], sizes = [1, 4], strides = [1, 1]} : vector<2x4xf32> to vector<1x4xf32>
    %15 = vector.extract_strided_slice %7 {offsets = [1, 0], sizes = [1, 4], strides = [1, 1]} : vector<2x4xf32> to vector<1x4xf32>
    %16 = vector.extract_strided_slice %8 {offsets = [0, 0], sizes = [1, 4], strides = [1, 1]} : vector<2x4xf32> to vector<1x4xf32>
    %17 = vector.extract_strided_slice %8 {offsets = [1, 0], sizes = [1, 4], strides = [1, 1]} : vector<2x4xf32> to vector<1x4xf32>
    %18 = vector.extract_strided_slice %9 {offsets = [0, 0], sizes = [1, 4], strides = [1, 1]} : vector<2x4xf32> to vector<1x4xf32>
    %19 = vector.extract_strided_slice %9 {offsets = [1, 0], sizes = [1, 4], strides = [1, 1]} : vector<2x4xf32> to vector<1x4xf32>
    %c21 = arith.constant 21 : index
    %20 = memref.load %arg0[%c21] : memref<22xf32, #tpu.memory_space<smem>>
    %c0_2 = arith.constant 0 : index
    %21 = memref.load %arg0[%c0_2] : memref<22xf32, #tpu.memory_space<smem>>
    %22 = vector.broadcast %21 : f32 to vector<1x4xf32>
    %23 = arith.mulf %14, %22 : vector<1x4xf32>
    %c3 = arith.constant 3 : index
    %24 = memref.load %arg0[%c3] : memref<22xf32, #tpu.memory_space<smem>>
    %25 = vector.broadcast %24 : f32 to vector<1x4xf32>
    %26 = arith.mulf %15, %25 : vector<1x4xf32>
    %27 = arith.addf %23, %26 : vector<1x4xf32>
    %c0_3 = arith.constant 0 : index
    %28 = memref.load %arg0[%c0_3] : memref<22xf32, #tpu.memory_space<smem>>
    %29 = vector.broadcast %28 : f32 to vector<1x4xf32>
    %30 = arith.mulf %16, %29 : vector<1x4xf32>
    %c3_4 = arith.constant 3 : index
    %31 = memref.load %arg0[%c3_4] : memref<22xf32, #tpu.memory_space<smem>>
    %32 = vector.broadcast %31 : f32 to vector<1x4xf32>
    %33 = arith.mulf %17, %32 : vector<1x4xf32>
    %34 = arith.addf %30, %33 : vector<1x4xf32>
    %c0_5 = arith.constant 0 : index
    %35 = memref.load %arg0[%c0_5] : memref<22xf32, #tpu.memory_space<smem>>
    %36 = vector.broadcast %35 : f32 to vector<1x4xf32>
    %37 = arith.mulf %18, %36 : vector<1x4xf32>
    %c3_6 = arith.constant 3 : index
    %38 = memref.load %arg0[%c3_6] : memref<22xf32, #tpu.memory_space<smem>>
    %39 = vector.broadcast %38 : f32 to vector<1x4xf32>
    %40 = arith.mulf %19, %39 : vector<1x4xf32>
    %41 = arith.addf %37, %40 : vector<1x4xf32>
    %c6 = arith.constant 6 : index
    %42 = memref.load %arg0[%c6] : memref<22xf32, #tpu.memory_space<smem>>
    %43 = vector.broadcast %42 : f32 to vector<1x4xf32>
    %44 = arith.mulf %10, %43 : vector<1x4xf32>
    %c9 = arith.constant 9 : index
    %45 = memref.load %arg0[%c9] : memref<22xf32, #tpu.memory_space<smem>>
    %46 = vector.broadcast %45 : f32 to vector<1x4xf32>
    %47 = arith.mulf %11, %46 : vector<1x4xf32>
    %48 = arith.addf %44, %47 : vector<1x4xf32>
    %c6_7 = arith.constant 6 : index
    %49 = memref.load %arg0[%c6_7] : memref<22xf32, #tpu.memory_space<smem>>
    %50 = vector.broadcast %49 : f32 to vector<1x4xf32>
    %51 = arith.mulf %12, %50 : vector<1x4xf32>
    %c9_8 = arith.constant 9 : index
    %52 = memref.load %arg0[%c9_8] : memref<22xf32, #tpu.memory_space<smem>>
    %53 = vector.broadcast %52 : f32 to vector<1x4xf32>
    %54 = arith.mulf %13, %53 : vector<1x4xf32>
    %55 = arith.addf %51, %54 : vector<1x4xf32>
    %c12 = arith.constant 12 : index
    %56 = memref.load %arg0[%c12] : memref<22xf32, #tpu.memory_space<smem>>
    %cst = arith.constant 5.000000e-01 : f32
    %57 = vector.broadcast %cst : f32 to vector<1x4xf32>
    %58 = arith.mulf %57, %27 : vector<1x4xf32>
    %59 = vector.broadcast %56 : f32 to vector<1x4xf32>
    %60 = arith.subf %59, %58 : vector<1x4xf32>
    %61 = arith.addf %60, %48 : vector<1x4xf32>
    %62 = math.exp %61 : vector<1x4xf32>
    %cst_9 = arith.constant 1.000000e-10 : f32
    %63 = vector.broadcast %cst_9 : f32 to vector<1x4xf32>
    %64 = arith.addf %62, %63 : vector<1x4xf32>
    %65 = arith.addf %41, %34 : vector<1x4xf32>
    %cst_10 = arith.constant 2.000000e+00 : f32
    %66 = vector.broadcast %cst_10 : f32 to vector<1x4xf32>
    %67 = arith.mulf %66, %55 : vector<1x4xf32>
    %68 = arith.subf %65, %67 : vector<1x4xf32>
    %c18 = arith.constant 18 : index
    %69 = memref.load %arg0[%c18] : memref<22xf32, #tpu.memory_space<smem>>
    %70 = vector.broadcast %69 : f32 to vector<1x4xf32>
    %71 = arith.addf %68, %70 : vector<1x4xf32>
    %c1 = arith.constant 1 : index
    %72 = memref.load %arg0[%c1] : memref<22xf32, #tpu.memory_space<smem>>
    %73 = vector.broadcast %72 : f32 to vector<1x4xf32>
    %74 = arith.mulf %14, %73 : vector<1x4xf32>
    %c4 = arith.constant 4 : index
    %75 = memref.load %arg0[%c4] : memref<22xf32, #tpu.memory_space<smem>>
    %76 = vector.broadcast %75 : f32 to vector<1x4xf32>
    %77 = arith.mulf %15, %76 : vector<1x4xf32>
    %78 = arith.addf %74, %77 : vector<1x4xf32>
    %c1_11 = arith.constant 1 : index
    %79 = memref.load %arg0[%c1_11] : memref<22xf32, #tpu.memory_space<smem>>
    %80 = vector.broadcast %79 : f32 to vector<1x4xf32>
    %81 = arith.mulf %16, %80 : vector<1x4xf32>
    %c4_12 = arith.constant 4 : index
    %82 = memref.load %arg0[%c4_12] : memref<22xf32, #tpu.memory_space<smem>>
    %83 = vector.broadcast %82 : f32 to vector<1x4xf32>
    %84 = arith.mulf %17, %83 : vector<1x4xf32>
    %85 = arith.addf %81, %84 : vector<1x4xf32>
    %c1_13 = arith.constant 1 : index
    %86 = memref.load %arg0[%c1_13] : memref<22xf32, #tpu.memory_space<smem>>
    %87 = vector.broadcast %86 : f32 to vector<1x4xf32>
    %88 = arith.mulf %18, %87 : vector<1x4xf32>
    %c4_14 = arith.constant 4 : index
    %89 = memref.load %arg0[%c4_14] : memref<22xf32, #tpu.memory_space<smem>>
    %90 = vector.broadcast %89 : f32 to vector<1x4xf32>
    %91 = arith.mulf %19, %90 : vector<1x4xf32>
    %92 = arith.addf %88, %91 : vector<1x4xf32>
    %c7 = arith.constant 7 : index
    %93 = memref.load %arg0[%c7] : memref<22xf32, #tpu.memory_space<smem>>
    %94 = vector.broadcast %93 : f32 to vector<1x4xf32>
    %95 = arith.mulf %10, %94 : vector<1x4xf32>
    %c10 = arith.constant 10 : index
    %96 = memref.load %arg0[%c10] : memref<22xf32, #tpu.memory_space<smem>>
    %97 = vector.broadcast %96 : f32 to vector<1x4xf32>
    %98 = arith.mulf %11, %97 : vector<1x4xf32>
    %99 = arith.addf %95, %98 : vector<1x4xf32>
    %c7_15 = arith.constant 7 : index
    %100 = memref.load %arg0[%c7_15] : memref<22xf32, #tpu.memory_space<smem>>
    %101 = vector.broadcast %100 : f32 to vector<1x4xf32>
    %102 = arith.mulf %12, %101 : vector<1x4xf32>
    %c10_16 = arith.constant 10 : index
    %103 = memref.load %arg0[%c10_16] : memref<22xf32, #tpu.memory_space<smem>>
    %104 = vector.broadcast %103 : f32 to vector<1x4xf32>
    %105 = arith.mulf %13, %104 : vector<1x4xf32>
    %106 = arith.addf %102, %105 : vector<1x4xf32>
    %c13 = arith.constant 13 : index
    %107 = memref.load %arg0[%c13] : memref<22xf32, #tpu.memory_space<smem>>
    %cst_17 = arith.constant 5.000000e-01 : f32
    %108 = vector.broadcast %cst_17 : f32 to vector<1x4xf32>
    %109 = arith.mulf %108, %78 : vector<1x4xf32>
    %110 = vector.broadcast %107 : f32 to vector<1x4xf32>
    %111 = arith.subf %110, %109 : vector<1x4xf32>
    %112 = arith.addf %111, %99 : vector<1x4xf32>
    %113 = math.exp %112 : vector<1x4xf32>
    %cst_18 = arith.constant 1.000000e-10 : f32
    %114 = vector.broadcast %cst_18 : f32 to vector<1x4xf32>
    %115 = arith.addf %113, %114 : vector<1x4xf32>
    %116 = arith.addf %92, %85 : vector<1x4xf32>
    %cst_19 = arith.constant 2.000000e+00 : f32
    %117 = vector.broadcast %cst_19 : f32 to vector<1x4xf32>
    %118 = arith.mulf %117, %106 : vector<1x4xf32>
    %119 = arith.subf %116, %118 : vector<1x4xf32>
    %c19 = arith.constant 19 : index
    %120 = memref.load %arg0[%c19] : memref<22xf32, #tpu.memory_space<smem>>
    %121 = vector.broadcast %120 : f32 to vector<1x4xf32>
    %122 = arith.addf %119, %121 : vector<1x4xf32>
    %123 = arith.addf %64, %115 : vector<1x4xf32>
    %124 = arith.addf %71, %122 : vector<1x4xf32>
    %c2 = arith.constant 2 : index
    %125 = memref.load %arg0[%c2] : memref<22xf32, #tpu.memory_space<smem>>
    %126 = vector.broadcast %125 : f32 to vector<1x4xf32>
    %127 = arith.mulf %14, %126 : vector<1x4xf32>
    %c5 = arith.constant 5 : index
    %128 = memref.load %arg0[%c5] : memref<22xf32, #tpu.memory_space<smem>>
    %129 = vector.broadcast %128 : f32 to vector<1x4xf32>
    %130 = arith.mulf %15, %129 : vector<1x4xf32>
    %131 = arith.addf %127, %130 : vector<1x4xf32>
    %c2_20 = arith.constant 2 : index
    %132 = memref.load %arg0[%c2_20] : memref<22xf32, #tpu.memory_space<smem>>
    %133 = vector.broadcast %132 : f32 to vector<1x4xf32>
    %134 = arith.mulf %16, %133 : vector<1x4xf32>
    %c5_21 = arith.constant 5 : index
    %135 = memref.load %arg0[%c5_21] : memref<22xf32, #tpu.memory_space<smem>>
    %136 = vector.broadcast %135 : f32 to vector<1x4xf32>
    %137 = arith.mulf %17, %136 : vector<1x4xf32>
    %138 = arith.addf %134, %137 : vector<1x4xf32>
    %c2_22 = arith.constant 2 : index
    %139 = memref.load %arg0[%c2_22] : memref<22xf32, #tpu.memory_space<smem>>
    %140 = vector.broadcast %139 : f32 to vector<1x4xf32>
    %141 = arith.mulf %18, %140 : vector<1x4xf32>
    %c5_23 = arith.constant 5 : index
    %142 = memref.load %arg0[%c5_23] : memref<22xf32, #tpu.memory_space<smem>>
    %143 = vector.broadcast %142 : f32 to vector<1x4xf32>
    %144 = arith.mulf %19, %143 : vector<1x4xf32>
    %145 = arith.addf %141, %144 : vector<1x4xf32>
    %c8 = arith.constant 8 : index
    %146 = memref.load %arg0[%c8] : memref<22xf32, #tpu.memory_space<smem>>
    %147 = vector.broadcast %146 : f32 to vector<1x4xf32>
    %148 = arith.mulf %10, %147 : vector<1x4xf32>
    %c11 = arith.constant 11 : index
    %149 = memref.load %arg0[%c11] : memref<22xf32, #tpu.memory_space<smem>>
    %150 = vector.broadcast %149 : f32 to vector<1x4xf32>
    %151 = arith.mulf %11, %150 : vector<1x4xf32>
    %152 = arith.addf %148, %151 : vector<1x4xf32>
    %c8_24 = arith.constant 8 : index
    %153 = memref.load %arg0[%c8_24] : memref<22xf32, #tpu.memory_space<smem>>
    %154 = vector.broadcast %153 : f32 to vector<1x4xf32>
    %155 = arith.mulf %12, %154 : vector<1x4xf32>
    %c11_25 = arith.constant 11 : index
    %156 = memref.load %arg0[%c11_25] : memref<22xf32, #tpu.memory_space<smem>>
    %157 = vector.broadcast %156 : f32 to vector<1x4xf32>
    %158 = arith.mulf %13, %157 : vector<1x4xf32>
    %159 = arith.addf %155, %158 : vector<1x4xf32>
    %c14 = arith.constant 14 : index
    %160 = memref.load %arg0[%c14] : memref<22xf32, #tpu.memory_space<smem>>
    %cst_26 = arith.constant 5.000000e-01 : f32
    %161 = vector.broadcast %cst_26 : f32 to vector<1x4xf32>
    %162 = arith.mulf %161, %131 : vector<1x4xf32>
    %163 = vector.broadcast %160 : f32 to vector<1x4xf32>
    %164 = arith.subf %163, %162 : vector<1x4xf32>
    %165 = arith.addf %164, %152 : vector<1x4xf32>
    %166 = math.exp %165 : vector<1x4xf32>
    %cst_27 = arith.constant 1.000000e-10 : f32
    %167 = vector.broadcast %cst_27 : f32 to vector<1x4xf32>
    %168 = arith.addf %166, %167 : vector<1x4xf32>
    %169 = arith.addf %145, %138 : vector<1x4xf32>
    %cst_28 = arith.constant 2.000000e+00 : f32
    %170 = vector.broadcast %cst_28 : f32 to vector<1x4xf32>
    %171 = arith.mulf %170, %159 : vector<1x4xf32>
    %172 = arith.subf %169, %171 : vector<1x4xf32>
    %c20 = arith.constant 20 : index
    %173 = memref.load %arg0[%c20] : memref<22xf32, #tpu.memory_space<smem>>
    %174 = vector.broadcast %173 : f32 to vector<1x4xf32>
    %175 = arith.addf %172, %174 : vector<1x4xf32>
    %176 = arith.addf %123, %168 : vector<1x4xf32>
    %177 = arith.addf %124, %175 : vector<1x4xf32>
    %178 = tpu.reciprocal %176 : vector<1x4xf32> -> vector<1x4xf32>
    %179 = math.log %176 : vector<1x4xf32>
    %180 = arith.mulf %64, %178 : vector<1x4xf32>
    %181 = arith.subf %61, %179 : vector<1x4xf32>
    %c15 = arith.constant 15 : index
    %182 = memref.load %arg0[%c15] : memref<22xf32, #tpu.memory_space<smem>>
    %183 = vector.broadcast %182 : f32 to vector<1x4xf32>
    %184 = arith.subf %181, %183 : vector<1x4xf32>
    %185 = arith.mulf %180, %184 : vector<1x4xf32>
    %186 = arith.mulf %115, %178 : vector<1x4xf32>
    %187 = arith.subf %112, %179 : vector<1x4xf32>
    %c16 = arith.constant 16 : index
    %188 = memref.load %arg0[%c16] : memref<22xf32, #tpu.memory_space<smem>>
    %189 = vector.broadcast %188 : f32 to vector<1x4xf32>
    %190 = arith.subf %187, %189 : vector<1x4xf32>
    %191 = arith.mulf %186, %190 : vector<1x4xf32>
    %192 = arith.addf %185, %191 : vector<1x4xf32>
    %193 = arith.mulf %168, %178 : vector<1x4xf32>
    %194 = arith.subf %165, %179 : vector<1x4xf32>
    %c17 = arith.constant 17 : index
    %195 = memref.load %arg0[%c17] : memref<22xf32, #tpu.memory_space<smem>>
    %196 = vector.broadcast %195 : f32 to vector<1x4xf32>
    %197 = arith.subf %194, %196 : vector<1x4xf32>
    %198 = arith.mulf %193, %197 : vector<1x4xf32>
    %199 = arith.addf %192, %198 : vector<1x4xf32>
    %200 = vector.broadcast %20 : f32 to vector<1x4xf32>
    %201 = arith.addf %177, %200 : vector<1x4xf32>
    %cst_29 = arith.constant 1.000000e+00 : f32
    %202 = vector.broadcast %cst_29 : f32 to vector<2x4xf32>
    %203 = arith.addf %6, %202 : vector<2x4xf32>
    %cst_30 = arith.constant dense<0.000000e+00> : vector<4xf32>
    %204 = vector.multi_reduction <add>, %203, %cst_30 [0] : vector<2x4xf32> to vector<4xf32>
    %205 = vector.shape_cast %204 : vector<4xf32> to vector<1x4xf32>
    %cst_31 = arith.constant 5.000000e-01 : f32
    %206 = vector.broadcast %cst_31 : f32 to vector<1x4xf32>
    %207 = arith.mulf %206, %205 : vector<1x4xf32>
    %208 = arith.subf %201, %199 : vector<1x4xf32>
    %209 = arith.subf %208, %207 : vector<1x4xf32>
    %c0_32 = arith.constant 0 : index
    %c0_33 = arith.constant 0 : index
    %210 = vector.load %arg2[%c0_32, %c0_33] : memref<4x4xf32, #tpu.memory_space<vmem>>, vector<1x4xf32>
    tpu.vector_store %arg2[%c0_32, %c0_33], %180 {strides = array<i32>} : memref<4x4xf32, #tpu.memory_space<vmem>>, vector<1x4xf32>,
    %c1_34 = arith.constant 1 : index
    %c0_35 = arith.constant 0 : index
    %211 = vector.load %arg2[%c1_34, %c0_35] : memref<4x4xf32, #tpu.memory_space<vmem>>, vector<1x4xf32>
    tpu.vector_store %arg2[%c1_34, %c0_35], %186 {strides = array<i32>} : memref<4x4xf32, #tpu.memory_space<vmem>>, vector<1x4xf32>,
    %c2_36 = arith.constant 2 : index
    %c0_37 = arith.constant 0 : index
    %212 = vector.load %arg2[%c2_36, %c0_37] : memref<4x4xf32, #tpu.memory_space<vmem>>, vector<1x4xf32>
    tpu.vector_store %arg2[%c2_36, %c0_37], %193 {strides = array<i32>} : memref<4x4xf32, #tpu.memory_space<vmem>>, vector<1x4xf32>,
    %c3_38 = arith.constant 3 : index
    %c0_39 = arith.constant 0 : index
    %213 = vector.load %arg2[%c3_38, %c0_39] : memref<4x4xf32, #tpu.memory_space<vmem>>, vector<1x4xf32>
    tpu.vector_store %arg2[%c3_38, %c0_39], %209 {strides = array<i32>} : memref<4x4xf32, #tpu.memory_space<vmem>>, vector<1x4xf32>,
    return
  }
}

</mosaic_0001>

<llo_original>
// kernel: tpu_custom_call.1
$region0: #{tpu_custom_call.1}
  #allocation0 [shape = 'u32[]', space=smem, size = 0x4, offset = 0x4, fixed_abs, tag = 'smem constant byte address 0x4 - core index']
  #allocation1 [shape = 'u32[144,128]{1,0:T(1,128)}', space=vmem, size = 0x12000, scoped, tag = 'internal scratch']
  %s0 = inlined_call_operand.hbm [shape: f32[22], index: 0, kind: input, shape index: {}]
  %s1 = inlined_call_operand.hbm [shape: f32[3,2,4], index: 1, kind: input, shape index: {}]
  %s2 = inlined_call_operand.hbm [shape: f32[4,4], index: 2, kind: output, shape index: {}]
  %s3 = sld [smem:[#allocation0]]
  $region26: #{tpu_custom_call.1} parent=0
    _
  %s5 = ssub.s32 1, %s3
  %s6 = scalar_select 0, %s5, %s3
  $region1: #{tpu_custom_call.1} parent=0
    #allocation2 [shape = 'u8[512]{0}', space=smem, size = 0x200, scoped, tag = 'input window, operand 0, single buffered']
    #allocation3 [shape = 's32[1]{0}', space=sflag, size = 0x4, scoped, tag = 'scoped memory for tpu_custom_call.1']
    #allocation4 [shape = 's32[1]{0}', space=sflag, size = 0x4, scoped, tag = 'scoped memory for tpu_custom_call.1']
    #allocation5 [shape = 's32[1]{0}', space=sflag, size = 0x4, scoped, tag = 'scoped memory for tpu_custom_call.1']
    #allocation6 [shape = 'u8[3072]{0}', space=vmem, size = 0xc00, scoped, tag = 'input window, operand 1, single buffered']
    #allocation7 [shape = 'u8[2048]{0}', space=vmem, size = 0x800, scoped, tag = 'output window, operand 0, single buffered']
    %7 = vsyncpa [#allocation5], 0
    %8 = vsyncpa [#allocation3], 0
    %9 = vsyncpa [#allocation4], 0
    // Predicated region
    $region2: #{tpu_custom_call.1} parent=1 // pred_check
      _
    $region3: #{tpu_custom_call.1} parent=1 // pred_check_branch
      %11 = sbr.rel (0) target = $region5
    $region4: #{tpu_custom_call.1} parent=1 // pred_region
      %s13 = ssub.s32 16, 16
      %14 = vsyncadd [#allocation5], %s13
      %17 = dma.hbm_to_smem %s0, 16, [#allocation2], [#allocation5]
    $region5: #{tpu_custom_call.1} parent=1 // pred_fallthru
      _
    // Predicated region
    $region6: #{tpu_custom_call.1} parent=1 // pred_check
      _
    $region7: #{tpu_custom_call.1} parent=1 // pred_check_branch
      %19 = sbr.rel (0) target = $region9
    $region8: #{tpu_custom_call.1} parent=1 // pred_region
      %s21 = ssub.s32 96, 96
      %22 = vsyncadd [#allocation3], %s21
      %s23 = sshll.u32 [#allocation6], 4
      %s24 = int_to_ptr.vmem [resolvable:$true] %s23
      %29 = dma.hbm_to_vmem [thread:$0]  %s1, 96, %s24, [#allocation3], 32, 32, 2
    $region9: #{tpu_custom_call.1} parent=1 // pred_fallthru
      _
    // Predicated region
    $region10: #{tpu_custom_call.1} parent=1 // pred_check
      _
    $region11: #{tpu_custom_call.1} parent=1 // pred_check_branch
      %31 = sbr.rel (0) target = $region13
    $region12: #{tpu_custom_call.1} parent=1 // pred_region
      %32 = dma.done [#allocation5], 16
    $region13: #{tpu_custom_call.1} parent=1 // pred_fallthru
      _
    // Predicated region
    $region14: #{tpu_custom_call.1} parent=1 // pred_check
      _
    $region15: #{tpu_custom_call.1} parent=1 // pred_check_branch
      %34 = sbr.rel (0) target = $region17
    $region16: #{tpu_custom_call.1} parent=1 // pred_region
      %35 = dma.done [#allocation3], 96
    $region17: #{tpu_custom_call.1} parent=1 // pred_fallthru
      _
    %36 = sfence
    %v37 = vld [vmem:[#allocation6] sm:$0x3]
    %v38 = vld [vmem:[#allocation6 + $0x2] sm:$0x3]
    %v39 = vld [vmem:[#allocation6 + $0x4] sm:$0x3]
    %v40 = vmul.f32 %v37, %v37
    %v41 = vmul.f32 %v38, %v38
    %v42 = vmul.f32 %v39, 1.442695
    %v43 = vpow.pop %v42
    %s44 = sld [smem:[#allocation2 + $0x15]]
    %s45 = sld [smem:[#allocation2]]
    %v46 = vstv %s45
    %v47 = vmul.f32 %v40, %v46
    %s48 = sld [smem:[#allocation2 + $0x3]]
    %v49 = vstv %s48
    %v50 = vmul.f32 %v40, %v49
    %v52 = vrot.slane %v50, 1
    %v54 = vadd.f32 %v47, %v52
    %v55 = vmul.f32 %v41, %v46
    %v56 = vmul.f32 %v41, %v49
    %v58 = vrot.slane %v56, 1
    %v60 = vadd.f32 %v55, %v58
    %v61 = vmul.f32 %v43, %v46
    %v62 = vmul.f32 %v43, %v49
    %v64 = vrot.slane %v62, 1
    %v66 = vadd.f32 %v61, %v64
    %s67 = sld [smem:[#allocation2 + $0x6]]
    %v68 = vstv %s67
    %v69 = vmul.f32 %v37, %v68
    %s70 = sld [smem:[#allocation2 + $0x9]]
    %v71 = vstv %s70
    %v72 = vmul.f32 %v37, %v71
    %v74 = vrot.slane %v72, 1
    %v76 = vadd.f32 %v69, %v74
    %v77 = vmul.f32 %v38, %v68
    %v78 = vmul.f32 %v38, %v71
    %v80 = vrot.slane %v78, 1
    %v82 = vadd.f32 %v77, %v80
    %s83 = sld [smem:[#allocation2 + $0xc]]
    %v84 = vmul.f32 %v54, 0.5
    %v85 = vstv %s83
    %v86 = vsub.f32 %v85, %v84
    %v87 = vadd.f32 %v86, %v76
    %v88 = vmul.f32 %v87, 1.442695
    %v89 = vpow.pop %v88
    %v90 = vadd.f32 %v89, 1e-10
    %v91 = vadd.f32 %v66, %v60
    %v92 = vmul.f32 %v82, 2.0
    %v93 = vsub.f32 %v91, %v92
    %s94 = sld [smem:[#allocation2 + $0x12]]
    %v95 = vstv %s94
    %v96 = vadd.f32 %v93, %v95
    %s97 = sld [smem:[#allocation2 + $0x1]]
    %v98 = vstv %s97
    %v99 = vmul.f32 %v40, %v98
    %s100 = sld [smem:[#allocation2 + $0x4]]
    %v101 = vstv %s100
    %v102 = vmul.f32 %v40, %v101
    %v104 = vrot.slane %v102, 1
    %v106 = vadd.f32 %v99, %v104
    %v107 = vmul.f32 %v41, %v98
    %v108 = vmul.f32 %v41, %v101
    %v110 = vrot.slane %v108, 1
    %v112 = vadd.f32 %v107, %v110
    %v113 = vmul.f32 %v43, %v98
    %v114 = vmul.f32 %v43, %v101
    %v116 = vrot.slane %v114, 1
    %v118 = vadd.f32 %v113, %v116
    %s119 = sld [smem:[#allocation2 + $0x7]]
    %v120 = vstv %s119
    %v121 = vmul.f32 %v37, %v120
    %s122 = sld [smem:[#allocation2 + $0xa]]
    %v123 = vstv %s122
    %v124 = vmul.f32 %v37, %v123
    %v126 = vrot.slane %v124, 1
    %v128 = vadd.f32 %v121, %v126
    %v129 = vmul.f32 %v38, %v120
    %v130 = vmul.f32 %v38, %v123
    %v132 = vrot.slane %v130, 1
    %v134 = vadd.f32 %v129, %v132
    %s135 = sld [smem:[#allocation2 + $0xd]]
    %v136 = vmul.f32 %v106, 0.5
    %v137 = vstv %s135
    %v138 = vsub.f32 %v137, %v136
    %v139 = vadd.f32 %v138, %v128
    %v140 = vmul.f32 %v139, 1.442695
    %v141 = vpow.pop %v140
    %v142 = vadd.f32 %v141, 1e-10
    %v143 = vadd.f32 %v118, %v112
    %v144 = vmul.f32 %v134, 2.0
    %v145 = vsub.f32 %v143, %v144
    %s146 = sld [smem:[#allocation2 + $0x13]]
    %v147 = vstv %s146
    %v148 = vadd.f32 %v145, %v147
    %v149 = vadd.f32 %v90, %v142
    %v150 = vadd.f32 %v96, %v148
    %s151 = sld [smem:[#allocation2 + $0x2]]
    %v152 = vstv %s151
    %v153 = vmul.f32 %v40, %v152
    %s154 = sld [smem:[#allocation2 + $0x5]]
    %v155 = vstv %s154
    %v156 = vmul.f32 %v40, %v155
    %v158 = vrot.slane %v156, 1
    %v160 = vadd.f32 %v153, %v158
    %v161 = vmul.f32 %v41, %v152
    %v162 = vmul.f32 %v41, %v155
    %v164 = vrot.slane %v162, 1
    %v166 = vadd.f32 %v161, %v164
    %v167 = vmul.f32 %v43, %v152
    %v168 = vmul.f32 %v43, %v155
    %v170 = vrot.slane %v168, 1
    %v172 = vadd.f32 %v167, %v170
    %s173 = sld [smem:[#allocation2 + $0x8]]
    %v174 = vstv %s173
    %v175 = vmul.f32 %v37, %v174
    %s176 = sld [smem:[#allocation2 + $0xb]]
    %v177 = vstv %s176
    %v178 = vmul.f32 %v37, %v177
    %v180 = vrot.slane %v178, 1
    %v182 = vadd.f32 %v175, %v180
    %v183 = vmul.f32 %v38, %v174
    %v184 = vmul.f32 %v38, %v177
    %v186 = vrot.slane %v184, 1
    %v188 = vadd.f32 %v183, %v186
    %s189 = sld [smem:[#allocation2 + $0xe]]
    %v190 = vmul.f32 %v160, 0.5
    %v191 = vstv %s189
    %v192 = vsub.f32 %v191, %v190
    %v193 = vadd.f32 %v192, %v182
    %v194 = vmul.f32 %v193, 1.442695
    %v195 = vpow.pop %v194
    %v196 = vadd.f32 %v195, 1e-10
    %v197 = vadd.f32 %v172, %v166
    %v198 = vmul.f32 %v188, 2.0
    %v199 = vsub.f32 %v197, %v198
    %s200 = sld [smem:[#allocation2 + $0x14]]
    %v201 = vstv %s200
    %v202 = vadd.f32 %v199, %v201
    %v203 = vadd.f32 %v149, %v196
    %v204 = vadd.f32 %v150, %v202
    %v205 = vrcp.pop %v203
    %v206 = vlog2.pop %v203
    %v207 = vmul.f32 %v206, 0.6931472
    %v208 = vmul.f32 %v90, %v205
    %v209 = vsub.f32 %v87, %v207
    %s210 = sld [smem:[#allocation2 + $0xf]]
    %v211 = vstv %s210
    %v212 = vsub.f32 %v209, %v211
    %v213 = vmul.f32 %v208, %v212
    %v214 = vmul.f32 %v142, %v205
    %v215 = vsub.f32 %v139, %v207
    %s216 = sld [smem:[#allocation2 + $0x10]]
    %v217 = vstv %s216
    %v218 = vsub.f32 %v215, %v217
    %v219 = vmul.f32 %v214, %v218
    %v220 = vadd.f32 %v213, %v219
    %v221 = vmul.f32 %v196, %v205
    %v222 = vsub.f32 %v193, %v207
    %s223 = sld [smem:[#allocation2 + $0x11]]
    %v224 = vstv %s223
    %v225 = vsub.f32 %v222, %v224
    %v226 = vmul.f32 %v221, %v225
    %v227 = vadd.f32 %v220, %v226
    %v228 = vstv %s44
    %v229 = vadd.f32 %v204, %v228
    %v230 = vadd.f32 %v39, 1.0
    %vm231 = vcmask 25600
    %v232 = vsel %vm231, %v230, 0.0
    %v233 = vrot.slane %v232, 4
    %v234 = vadd.f32 %v232, %v233
    %v235 = vrot.slane %v234, 2
    %v236 = vadd.f32 %v234, %v235
    %v237 = vrot.slane %v236, 1
    %v238 = vadd.f32 %v236, %v237
    %v239 = vmul.f32 %v238, 0.5
    %v240 = vsub.f32 %v229, %v227
    %v241 = vsub.f32 %v240, %v239
    %vm242 = vcmask 24576
    %243 = vst.msk [vmem:[#allocation7] sm:$0x1] %vm242, %v208
    %244 = vst.msk [vmem:[#allocation7 + $0x1] sm:$0x1] %vm242, %v214
    %245 = vst.msk [vmem:[#allocation7 + $0x2] sm:$0x1] %vm242, %v221
    %246 = vst.msk [vmem:[#allocation7 + $0x3] sm:$0x1] %vm242, %v241
    // Predicated region
    $region18: #{tpu_custom_call.1} parent=1 // pred_check
      _
    $region19: #{tpu_custom_call.1} parent=1 // pred_check_branch
      %248 = sbr.rel (0) target = $region21
    $region20: #{tpu_custom_call.1} parent=1 // pred_region
      %s250 = ssub.s32 64, 64
      %251 = vsyncadd [#allocation4], %s250
      %s253 = sshll.u32 [#allocation7], 4
      %s254 = int_to_ptr.vmem [resolvable:$true] %s253
      %256 = dma.vmem_to_hbm [thread:$0]  %s254, 64, %s2, [#allocation4]
    $region21: #{tpu_custom_call.1} parent=1 // pred_fallthru
      _
    // Predicated region
    $region22: #{tpu_custom_call.1} parent=1 // pred_check
      _
    $region23: #{tpu_custom_call.1} parent=1 // pred_check_branch
      %258 = sbr.rel (0) target = $region25
    $region24: #{tpu_custom_call.1} parent=1 // pred_region
      %259 = dma.done [#allocation4], 64
    $region25: #{tpu_custom_call.1} parent=1 // pred_fallthru
      _
    %260 = vsyncpa [#allocation3], 1
    %261 = vsyncpa [#allocation4], 1
    %262 = vsyncpa [#allocation5], 1

</llo_original>
